<compile_context>
chip_gen: v7x
topology: tpu7x:2x2x1
jax: 0.10.0
libtpu: 0.0.40
codegen_flags: <defaults>
</compile_context>

<pallas_src>
import math

import jax
import jax.numpy as jnp
from jax.experimental import pallas as pl
from jax.experimental.pallas import tpu as pltpu


# ----------------------------------------------------------------------------
# Fused kernel: per graph g (TB graphs per block)
#   z_src[g,i]   = x[g,i,:] . w_src                 (batched NT matmul, d=1)
#   dst[g,i,j]   = x[g,j,:] . w_dst                 (MXU NT matmul; broadcast
#                                                    over rows comes for free)
#   raw[g,i,j]   = z_src[g,i] + dst[g,i,j] + b      == Linear(2C,1) on edge(i,j)
#   s            = sigmoid(relu(raw))               (dropout p=0.0 -> identity)
#   es           = (s - min_g) / (max_g - min_g + 1e-6)
#   perm         = rate > 1 - es
# ----------------------------------------------------------------------------
def fused_edge_score_kernel(x_ref, wsrc_ref, wdst_ref, b_ref, rate_ref,
                            es_ref, perm_ref):
    tb, n, c = x_ref.shape
    x = x_ref[...]                                               # (TB, n, C)

    # Source projection -> (TB, n, 1).
    wsrc_b = jnp.broadcast_to(wsrc_ref[...][None], (tb, 1, c))   # (TB, 1, C)
    z_src = jnp.einsum('gic,gjc->gij', x, wsrc_b,
                       preferred_element_type=jnp.float32)       # (TB, n, 1)

    # Destination term, already broadcast over rows: dst[g,i,j] = x[g,j,:].w_dst
    wdst_b = jnp.broadcast_to(wdst_ref[...][None], (tb, n, c))   # (TB, n, C)
    dst = jnp.einsum('gic,gjc->gij', wdst_b, x,
                     preferred_element_type=jnp.float32)         # (TB, n, n)

    raw = z_src + dst + b_ref[...]                               # (TB, n, n)
    raw = jnp.maximum(raw, 0.0)                                  # ReLU (dropout p=0)
    s = 1.0 / (1.0 + jnp.exp(-raw))                              # sigmoid (exp -> EUP)

    # Per-graph min / max over the whole n x n edge grid (lane then sublane).
    min_v = jnp.min(jnp.min(s, axis=2, keepdims=True), axis=1, keepdims=True)
    max_v = jnp.max(jnp.max(s, axis=2, keepdims=True), axis=1, keepdims=True)
    es = (s - min_v) / (max_v - min_v + 1e-6)

    es_ref[...] = es
    perm_ref[...] = (rate_ref[...] > (1.0 - es)).astype(jnp.int32)


def _pick_tb(num_graphs, n, c):
    """Graphs per block: keep >=2 parallel blocks when possible, VMEM-bounded."""
    tb = min(8, max(1, num_graphs // 2))
    while num_graphs % tb:
        tb -= 1

    def working_set(t):   # double-buffered in + out blocks, bytes
        return 2 * 4 * (t * n * c + 3 * t * n * n)

    while tb > 1 and working_set(tb) > 24 * 1024 * 1024:
        tb -= 1
        while num_graphs % tb:
            tb -= 1
    return tb


def fused_edge_scores(x3, w_src, w_dst, bias, rate3):
    """x3: (B, n, C) f32; w_src/w_dst: (1, C); bias: (1, 1); rate3: (B, n, n)."""
    num_graphs, n, c = x3.shape
    tb = _pick_tb(num_graphs, n, c)
    grid = (num_graphs // tb,)

    block_bytes = 4 * (tb * n * c + 3 * tb * n * n + 2 * c + 1)
    # Well under v7x's 64 MiB physical VMEM; scales down for tiny problems.
    vmem_limit = int(min(48 * 1024 * 1024, max(4 * 1024 * 1024, 6 * block_bytes)))

    return pl.pallas_call(
        fused_edge_score_kernel,
        out_shape=(
            jax.ShapeDtypeStruct((num_graphs, n, n), jnp.float32),
            jax.ShapeDtypeStruct((num_graphs, n, n), jnp.int32),
        ),
        grid=grid,
        in_specs=[
            pl.BlockSpec((tb, n, c), lambda g: (g, 0, 0)),
            pl.BlockSpec((1, c), lambda g: (0, 0)),
            pl.BlockSpec((1, c), lambda g: (0, 0)),
            pl.BlockSpec((1, 1), lambda g: (0, 0)),
            pl.BlockSpec((tb, n, n), lambda g: (g, 0, 0)),
        ],
        out_specs=[
            pl.BlockSpec((tb, n, n), lambda g: (g, 0, 0)),
            pl.BlockSpec((tb, n, n), lambda g: (g, 0, 0)),
        ],
        compiler_params=pltpu.CompilerParams(
            dimension_semantics=("parallel",),
            vmem_limit_bytes=vmem_limit,
        ),
    )(x3, w_src, w_dst, bias, rate3)


# ----------------------------------------------------------------------------
# Forward pass (mirrors EdgePooling.forward with dropout=0.0, sigmoid scores)
# ----------------------------------------------------------------------------
def edge_pooling_forward(x, edge_index, batch, weight, bias, key):
    n_nodes, c = x.shape

    # max(batch)+1 forces a host sync, exactly as the torch reference does.
    num_graphs = int(batch.max()) + 1
    num_edges = edge_index.shape[1]
    assert num_edges % num_graphs == 0, \
        "EdgePooling reference assumes an equal edge count per graph"
    epg = num_edges // num_graphs
    nodes = int(math.isqrt(epg))
    # The reference's reshape + surviving-edge index arithmetic assume a dense
    # row-major n x n edge set per graph with graph-major node ordering; the
    # fused kernel inherits (and exploits) the same assumption.
    assert nodes * nodes == epg and n_nodes == num_graphs * nodes

    x3 = x.reshape(num_graphs, nodes, c)
    w_src = weight[0, :c].reshape(1, c)
    w_dst = weight[0, c:].reshape(1, c)
    b = bias.reshape(1, 1).astype(jnp.float32)

    # TODO(synk): an in-kernel pltpu.prng_* stream would avoid this (B, Epg)
    # HBM read, but those primitives have no interpret lowering; generate the
    # uniform `rate` (torch.rand_like) in glue instead.
    rate3 = jax.random.uniform(key, (num_graphs, nodes, nodes), dtype=jnp.float32)

    es3, perm3 = fused_edge_scores(x3, w_src, w_dst, b, rate3)
    new_edge_score = es3.reshape(num_graphs, epg)
    perm = perm3.reshape(num_graphs, epg)

    # TODO(synk): torch.nonzero has a data-dependent output shape; no
    # static-shape Pallas equivalent, so it and the surviving-edge index math
    # stay in plain JAX glue.
    pos_b, pos_e = jnp.nonzero(perm)
    new_edge_index0 = pos_e // nodes + pos_b * nodes
    new_edge_index1 = pos_e % nodes + pos_b * nodes
    new_edge_index = jnp.stack([new_edge_index0, new_edge_index1], axis=0)

    return x, new_edge_index, batch, new_edge_score


if __name__ == "__main__":
    key = jax.random.PRNGKey(0)
    kx, kw, kb, kr = jax.random.split(key, 4)

    # small problem: 2 graphs, 8 nodes each, dense adjacency (64 edges / graph)
    num_graphs, n_per_graph, C = 2, 8, 16
    N = num_graphs * n_per_graph
    Epg = n_per_graph * n_per_graph
    E = num_graphs * Epg

    x = jax.random.normal(kx, (N, C), dtype=jnp.float32)
    batch = jnp.repeat(jnp.arange(num_graphs, dtype=jnp.int32), n_per_graph)

    src, dst = [], []
    for g in range(num_graphs):
        for i in range(n_per_graph):
            for j in range(n_per_graph):
                src.append(g * n_per_graph + i)
                dst.append(g * n_per_graph + j)
    edge_index = jnp.array([src, dst], dtype=jnp.int32)             # (2, E)

    # Linear(2C, 1) parameters (torch layout: weight [1, 2C], bias [1])
    weight = jax.random.normal(kw, (1, 2 * C), dtype=jnp.float32) * 0.2
    bias = jnp.full((1,), 0.05, dtype=jnp.float32)

    x_out, new_edge_index, batch_out, new_edge_score = edge_pooling_forward(
        x, edge_index, batch, weight, bias, kr
    )
    jax.block_until_ready((x_out, new_edge_index, batch_out, new_edge_score))

    # shape checks
    assert x_out.shape == (N, C)
    assert new_edge_score.shape == (num_graphs, Epg)
    assert new_edge_index.shape[0] == 2
    assert batch_out.shape == (N,)

    # numeric check of the deterministic part (normalized edge scores) against
    # the gather-based pure-JAX reference (== torch forward in f32).
    xe = jnp.concatenate([x[edge_index[0]], x[edge_index[1]]], axis=-1)
    raw_ref = jnp.maximum(xe @ weight[0] + bias[0], 0.0)
    s_ref = jax.nn.sigmoid(raw_ref).reshape(num_graphs, Epg)
    mn = s_ref.min(axis=1, keepdims=True)
    mx = s_ref.max(axis=1, keepdims=True)
    es_ref = (s_ref - mn) / (mx - mn + 1e-6)
    assert bool(jnp.allclose(new_edge_score, es_ref, atol=1e-3, rtol=1e-3))

    print("KERNEL_OK")
</pallas_src>

<mosaic_0001>
module attributes {stable_mosaic.version = 11 : i64} {
  func.func @fused_edge_score_kernel(%arg0: i32, %arg1: memref<1x8x16xf32, #tpu.memory_space<vmem>>, %arg2: memref<1x16xf32, #tpu.memory_space<vmem>>, %arg3: memref<1x16xf32, #tpu.memory_space<vmem>>, %arg4: memref<1x1xf32, #tpu.memory_space<vmem>>, %arg5: memref<1x8x8xf32, #tpu.memory_space<vmem>>, %arg6: memref<1x8x8xf32, #tpu.memory_space<vmem>>, %arg7: memref<1x8x8xi32, #tpu.memory_space<vmem>>) attributes {dimension_semantics = [#tpu.dimension_semantics<parallel>], iteration_bounds = array<i64: 2>, scalar_prefetch = 0 : i64, scratch_operands = 0 : i64, tpu.core_type = #tpu.core_type<tc>, window_params = [{transform_indices = @transform_0, window_bounds = array<i64: 1, 8, 16>}, {pipeline_mode = #tpu.pipeline_mode<synchronous>, transform_indices = @transform_1, window_bounds = array<i64: 1, 16>}, {pipeline_mode = #tpu.pipeline_mode<synchronous>, transform_indices = @transform_2, window_bounds = array<i64: 1, 16>}, {pipeline_mode = #tpu.pipeline_mode<synchronous>, transform_indices = @transform_3, window_bounds = array<i64: 1, 1>}, {transform_indices = @transform_4, window_bounds = array<i64: 1, 8, 8>}, {transform_indices = @transform_5, window_bounds = array<i64: 1, 8, 8>}, {transform_indices = @transform_6, window_bounds = array<i64: 1, 8, 8>}]} {
    %c0 = arith.constant 0 : index
    %c0_0 = arith.constant 0 : index
    %c0_1 = arith.constant 0 : index
    %0 = vector.load %arg1[%c0, %c0_0, %c0_1] : memref<1x8x16xf32, #tpu.memory_space<vmem>>, vector<1x8x16xf32>
    %c0_2 = arith.constant 0 : index
    %c0_3 = arith.constant 0 : index
    %1 = vector.load %arg2[%c0_2, %c0_3] : memref<1x16xf32, #tpu.memory_space<vmem>>, vector<1x16xf32>
    %2 = vector.shape_cast %1 : vector<1x16xf32> to vector<1x1x16xf32>
    "tpu.trace_start"() <{level = 10 : i32, message = "gic,gjc->gij"}> : () -> ()
    %cst = arith.constant dense<0.000000e+00> : vector<1x8x1xf32>
    %3 = tpu.matmul %0, %2, %cst {dimension_numbers = #tpu.dot_dimension_numbers<[2], [2], [1], [1], [0, 0, 0, 1, 1, 1], [0], [0]>} : vector<1x8x16xf32>, vector<1x1x16xf32>, vector<1x8x1xf32> -> vector<1x8x1xf32>
    "tpu.trace_stop"() : () -> ()
    %c0_4 = arith.constant 0 : index
    %c0_5 = arith.constant 0 : index
    %4 = vector.load %arg3[%c0_4, %c0_5] : memref<1x16xf32, #tpu.memory_space<vmem>>, vector<1x16xf32>
    %5 = vector.shape_cast %4 : vector<1x16xf32> to vector<1x1x16xf32>
    %6 = vector.shape_cast %5 : vector<1x1x16xf32> to vector<1x1x16xf32>
    %7 = vector.broadcast %6 : vector<1x1x16xf32> to vector<1x8x16xf32>
    "tpu.trace_start"() <{level = 10 : i32, message = "gic,gjc->gij"}> : () -> ()
    %cst_6 = arith.constant dense<0.000000e+00> : vector<1x8x8xf32>
    %8 = tpu.matmul %7, %0, %cst_6 {dimension_numbers = #tpu.dot_dimension_numbers<[2], [2], [1], [1], [0, 0, 0, 1, 1, 1], [0], [0]>} : vector<1x8x16xf32>, vector<1x8x16xf32>, vector<1x8x8xf32> -> vector<1x8x8xf32>
    "tpu.trace_stop"() : () -> ()
    %9 = vector.broadcast %3 : vector<1x8x1xf32> to vector<1x8x8xf32>
    %10 = arith.addf %9, %8 : vector<1x8x8xf32>
    %c0_7 = arith.constant 0 : index
    %c0_8 = arith.constant 0 : index
    %11 = vector.load %arg4[%c0_7, %c0_8] : memref<1x1xf32, #tpu.memory_space<vmem>>, vector<1x1xf32>
    %12 = vector.shape_cast %11 : vector<1x1xf32> to vector<1x1x1xf32>
    %13 = vector.broadcast %12 : vector<1x1x1xf32> to vector<1x8x8xf32>
    %14 = arith.addf %10, %13 : vector<1x8x8xf32>
    %cst_9 = arith.constant 0.000000e+00 : f32
    %15 = vector.broadcast %cst_9 : f32 to vector<1x8x8xf32>
    %16 = arith.maximumf %14, %15 : vector<1x8x8xf32>
    %cst_10 = arith.constant 0.000000e+00 : f32
    %17 = vector.broadcast %cst_10 : f32 to vector<1x8x8xf32>
    %18 = arith.subf %17, %16 : vector<1x8x8xf32>
    %19 = math.exp %18 : vector<1x8x8xf32>
    %cst_11 = arith.constant 1.000000e+00 : f32
    %20 = vector.broadcast %cst_11 : f32 to vector<1x8x8xf32>
    %21 = arith.addf %20, %19 : vector<1x8x8xf32>
    %cst_12 = arith.constant 1.000000e+00 : f32
    %22 = vector.broadcast %cst_12 : f32 to vector<1x8x8xf32>
    %23 = arith.divf %22, %21 : vector<1x8x8xf32>
    %cst_13 = arith.constant dense<0x7F800000> : vector<1x8xf32>
    %24 = vector.multi_reduction <minimumf>, %23, %cst_13 [2] : vector<1x8x8xf32> to vector<1x8xf32>
    %25 = vector.shape_cast %24 : vector<1x8xf32> to vector<1x8x1xf32>
    %cst_14 = arith.constant dense<0x7F800000> : vector<1x1xf32>
    %26 = vector.multi_reduction <minimumf>, %25, %cst_14 [1] : vector<1x8x1xf32> to vector<1x1xf32>
    %27 = vector.shape_cast %26 : vector<1x1xf32> to vector<1x1x1xf32>
    %cst_15 = arith.constant dense<0xFF800000> : vector<1x8xf32>
    %28 = vector.multi_reduction <maximumf>, %23, %cst_15 [2] : vector<1x8x8xf32> to vector<1x8xf32>
    %29 = vector.shape_cast %28 : vector<1x8xf32> to vector<1x8x1xf32>
    %cst_16 = arith.constant dense<0xFF800000> : vector<1x1xf32>
    %30 = vector.multi_reduction <maximumf>, %29, %cst_16 [1] : vector<1x8x1xf32> to vector<1x1xf32>
    %31 = vector.shape_cast %30 : vector<1x1xf32> to vector<1x1x1xf32>
    %32 = vector.broadcast %27 : vector<1x1x1xf32> to vector<1x8x8xf32>
    %33 = arith.subf %23, %32 : vector<1x8x8xf32>
    %34 = arith.subf %31, %27 : vector<1x1x1xf32>
    %cst_17 = arith.constant 9.99999997E-7 : f32
    %35 = vector.broadcast %cst_17 : f32 to vector<1x1x1xf32>
    %36 = arith.addf %34, %35 : vector<1x1x1xf32>
    %37 = vector.broadcast %36 : vector<1x1x1xf32> to vector<1x8x8xf32>
    %38 = arith.divf %33, %37 : vector<1x8x8xf32>
    %c0_18 = arith.constant 0 : index
    %c0_19 = arith.constant 0 : index
    %c0_20 = arith.constant 0 : index
    %39 = vector.load %arg6[%c0_18, %c0_19, %c0_20] : memref<1x8x8xf32, #tpu.memory_space<vmem>>, vector<1x8x8xf32>
    tpu.vector_store %arg6[%c0_18, %c0_19, %c0_20], %38 {strides = array<i32>} : memref<1x8x8xf32, #tpu.memory_space<vmem>>, vector<1x8x8xf32>,
    %c0_21 = arith.constant 0 : index
    %c0_22 = arith.constant 0 : index
    %c0_23 = arith.constant 0 : index
    %40 = vector.load %arg5[%c0_21, %c0_22, %c0_23] : memref<1x8x8xf32, #tpu.memory_space<vmem>>, vector<1x8x8xf32>
    %cst_24 = arith.constant 1.000000e+00 : f32
    %41 = vector.broadcast %cst_24 : f32 to vector<1x8x8xf32>
    %42 = arith.subf %41, %38 : vector<1x8x8xf32>
    %43 = arith.cmpf ogt, %40, %42 : vector<1x8x8xf32>
    %44 = arith.extui %43 : vector<1x8x8xi1> to vector<1x8x8xi32>
    %c0_25 = arith.constant 0 : index
    %c0_26 = arith.constant 0 : index
    %c0_27 = arith.constant 0 : index
    %45 = vector.load %arg7[%c0_25, %c0_26, %c0_27] : memref<1x8x8xi32, #tpu.memory_space<vmem>>, vector<1x8x8xi32>
    tpu.vector_store %arg7[%c0_25, %c0_26, %c0_27], %44 {strides = array<i32>} : memref<1x8x8xi32, #tpu.memory_space<vmem>>, vector<1x8x8xi32>,
    return
  }
  func.func @transform_0(%arg0: i32) -> (i32, i32, i32) {
    %c0_i32 = arith.constant 0 : i32
    %c0_i32_0 = arith.constant 0 : i32
    %c0_i32_1 = arith.constant 0 : i32
    return %arg0, %c0_i32, %c0_i32_0 : i32, i32, i32
  }
  func.func @transform_1(%arg0: i32) -> (i32, i32) {
    %c0_i32 = arith.constant 0 : i32
    %c0_i32_0 = arith.constant 0 : i32
    %c0_i32_1 = arith.constant 0 : i32
    return %c0_i32, %c0_i32_0 : i32, i32
  }
  func.func @transform_2(%arg0: i32) -> (i32, i32) {
    %c0_i32 = arith.constant 0 : i32
    %c0_i32_0 = arith.constant 0 : i32
    %c0_i32_1 = arith.constant 0 : i32
    return %c0_i32, %c0_i32_0 : i32, i32
  }
  func.func @transform_3(%arg0: i32) -> (i32, i32) {
    %c0_i32 = arith.constant 0 : i32
    %c0_i32_0 = arith.constant 0 : i32
    %c0_i32_1 = arith.constant 0 : i32
    return %c0_i32, %c0_i32_0 : i32, i32
  }
  func.func @transform_4(%arg0: i32) -> (i32, i32, i32) {
    %c0_i32 = arith.constant 0 : i32
    %c0_i32_0 = arith.constant 0 : i32
    %c0_i32_1 = arith.constant 0 : i32
    return %arg0, %c0_i32, %c0_i32_0 : i32, i32, i32
  }
  func.func @transform_5(%arg0: i32) -> (i32, i32, i32) {
    %c0_i32 = arith.constant 0 : i32
    %c0_i32_0 = arith.constant 0 : i32
    %c0_i32_1 = arith.constant 0 : i32
    return %arg0, %c0_i32, %c0_i32_0 : i32, i32, i32
  }
  func.func @transform_6(%arg0: i32) -> (i32, i32, i32) {
    %c0_i32 = arith.constant 0 : i32
    %c0_i32_0 = arith.constant 0 : i32
    %c0_i32_1 = arith.constant 0 : i32
    return %arg0, %c0_i32, %c0_i32_0 : i32, i32, i32
  }
}

</mosaic_0001>

<llo_original>
// kernel: tpu_custom_call.1
$region0: #{tpu_custom_call.1}
  #allocation0 [shape = 'u32[]', space=smem, size = 0x4, offset = 0x4, fixed_abs, tag = 'smem constant byte address 0x4 - core index']
  #allocation1 [shape = 'u32[144,128]{1,0:T(1,128)}', space=vmem, size = 0x12000, scoped, tag = 'internal scratch']
  #allocation2 [shape = 'f32[1,1]{1,0:T(1,128)S(1)}', space=vmem, size = 0x200, scoped, tag = 'scoped memory for tpu_custom_call.1']
  %s0 = inlined_call_operand.hbm [shape: f32[2,8,16], index: 0, kind: input, shape index: {}]
  %s1 = inlined_call_operand.vmem [shape: f32[1,16], index: 1, kind: input, shape index: {}]
  %s2 = inlined_call_operand.vmem [shape: f32[1,16], index: 2, kind: input, shape index: {}]
  %s3 = inlined_call_operand.<no memory space> [shape: f32[1,1], index: 3, kind: input, shape index: {}]
  %s4 = inlined_call_operand.hbm [shape: f32[2,8,8], index: 4, kind: input, shape index: {}]
  %s5 = inlined_call_operand.hbm [shape: f32[2,8,8], index: 5, kind: output, shape index: {0}]
  %s6 = inlined_call_operand.hbm [shape: s32[2,8,8], index: 6, kind: output, shape index: {1}]
  %7 = xla_tuple %s5, %s6
  %s8 = sld [smem:[#allocation0]]
  $region69: #{tpu_custom_call.1} parent=0
    _
  %s10 = ssub.s32 1, %s8
  %s11 = scalar_select 0, %s10, %s8
  %v12 = vstv %s3
  %13 = vst [vmem:[#allocation2] sm:$0x1] %v12
  $region1: #{tpu_custom_call.1} parent=0
    #allocation3 [shape = 'u8[8192]{0}', space=vmem, size = 0x2000, scoped, tag = 'input window, operand 0']
    #allocation4 [shape = 's32[2]{0}', space=sflag, size = 0x8, scoped, tag = 'scoped memory for tpu_custom_call.1']
    #allocation5 [shape = 's32[2]{0}', space=sflag, size = 0x8, scoped, tag = 'scoped memory for tpu_custom_call.1']
    #allocation6 [shape = 'u8[8192]{0}', space=vmem, size = 0x2000, scoped, tag = 'input window, operand 4']
    #allocation7 [shape = 's32[2]{0}', space=sflag, size = 0x8, scoped, tag = 'scoped memory for tpu_custom_call.1']
    #allocation8 [shape = 'u8[8192]{0}', space=vmem, size = 0x2000, scoped, tag = 'output window, operand 0']
    #allocation9 [shape = 'u8[8192]{0}', space=vmem, size = 0x2000, scoped, tag = 'output window, operand 1']
    #allocation10 [shape = 's32[2]{0}', space=sflag, size = 0x8, scoped, tag = 'scoped memory for tpu_custom_call.1']
    %14 = vsyncpa [#allocation4], 0
    %s15 = scalar_lea.sflag [#allocation4], 1
    %16 = vsyncpa %s15, 0
    %17 = vsyncpa [#allocation7], 0
    %s18 = scalar_lea.sflag [#allocation7], 1
    %19 = vsyncpa %s18, 0
    %20 = vsyncpa [#allocation5], 0
    %s21 = scalar_lea.sflag [#allocation5], 1
    %22 = vsyncpa %s21, 0
    %23 = vsyncpa [#allocation10], 0
    %s24 = scalar_lea.sflag [#allocation10], 1
    %25 = vsyncpa %s24, 0
    loop: start=0, step=1, limit=4
    $region2: #{tpu_custom_call.1} parent=1 // loop_pre_header
      _
    $region3: #{tpu_custom_call.1} parent=1 // loop_header
      %s27 = sphi 0, %s31
      %p28 = scmp.ge.s32.totalorder %s27, 4
      %s37 = sphi 0, %s39
      %s40 = sphi 0, %s37
      %s41 = sphi 0, %s40
      %s57 = sphi 0, %s41
      %s61 = sphi 0, %s61
      %s63 = sphi 0, %s61
      %s64 = sphi 0, %s63
      %s78 = sphi 0, %s64
      %s82 = sphi 0, %s82
      %s84 = sphi 0, %s82
      %s85 = sphi 0, %s84
      %s99 = sphi 0, %s85
      %s103 = sphi 0, %s103
      %s105 = sphi 0, %s103
      %s106 = sphi 0, %s105
      %s120 = sphi 0, %s106
      %s126 = sphi 0, %s128
      %s129 = sphi 0, %s126
      %s130 = sphi 0, %s129
      %s146 = sphi 0, %s130
      %s152 = sphi 0, %s154
      %s155 = sphi 0, %s152
      %s156 = sphi 0, %s155
      %s172 = sphi 0, %s156
      %s178 = sphi 0, %s180
      %s181 = sphi 0, %s178
      %s182 = sphi 0, %s181
      %s198 = sphi 0, %s182
    $region4: #{tpu_custom_call.1} parent=1 // loop_header_branch
      %30 = sbr.rel (%p28) target = $region8
    $region5: #{tpu_custom_call.1} parent=1 // loop_body
      %s32 = ssub.s32 %s27, 1
      %s33 = ssub.s32 %s27, 2
      %s34 = sadd.s32 %s27, 1
      %s35 = ssub.s32 %s27, %s34
      %p36 = scmp.eq.s32.totalorder %s35, 0
      %s38 = sadd.s32 %s37, 1
      %s39 = scalar_select %p36, %s37, %s38
      %p42 = pneg %p36
      %p43 = scmp.eq.s32.totalorder %s27, 1
      %p44 = por %p42, %p43
      %p45 = scmp.ne.s32.totalorder %s37, %s40
      %p46 = scmp.eq.s32.totalorder %s27, 0
      %p47 = por %p45, %p46
      %p48 = scmp.ne.s32.totalorder %s37, %s40
      %p49 = scmp.eq.s32.totalorder %s32, 1
      %p50 = por %p48, %p49
      %p51 = scmp.ne.s32.totalorder %s40, %s41
      %p52 = scmp.eq.s32.totalorder %s32, 0
      %p53 = por %p51, %p52
      %p54 = scmp.ne.s32.totalorder %s40, %s41
      %p55 = scmp.eq.s32.totalorder %s33, 1
      %p56 = por %p54, %p55
      %p58 = scmp.ne.s32.totalorder %s41, %s57
      %p59 = scmp.eq.s32.totalorder %s33, 0
      %p60 = por %p58, %p59
      %s62 = sadd.s32 %s61, 1
      %p65 = scmp.eq.s32.totalorder %s27, 1
      %p66 = scmp.ne.s32.totalorder %s61, %s63
      %p67 = scmp.eq.s32.totalorder %s27, 0
      %p68 = por %p66, %p67
      %p69 = scmp.ne.s32.totalorder %s61, %s63
      %p70 = scmp.eq.s32.totalorder %s32, 1
      %p71 = por %p69, %p70
      %p72 = scmp.ne.s32.totalorder %s63, %s64
      %p73 = scmp.eq.s32.totalorder %s32, 0
      %p74 = por %p72, %p73
      %p75 = scmp.ne.s32.totalorder %s63, %s64
      %p76 = scmp.eq.s32.totalorder %s33, 1
      %p77 = por %p75, %p76
      %p79 = scmp.ne.s32.totalorder %s64, %s78
      %p80 = scmp.eq.s32.totalorder %s33, 0
      %p81 = por %p79, %p80
      %s83 = sadd.s32 %s82, 1
      %p86 = scmp.eq.s32.totalorder %s27, 1
      %p87 = scmp.ne.s32.totalorder %s82, %s84
      %p88 = scmp.eq.s32.totalorder %s27, 0
      %p89 = por %p87, %p88
      %p90 = scmp.ne.s32.totalorder %s82, %s84
      %p91 = scmp.eq.s32.totalorder %s32, 1
      %p92 = por %p90, %p91
      %p93 = scmp.ne.s32.totalorder %s84, %s85
      %p94 = scmp.eq.s32.totalorder %s32, 0
      %p95 = por %p93, %p94
      %p96 = scmp.ne.s32.totalorder %s84, %s85
      %p97 = scmp.eq.s32.totalorder %s33, 1
      %p98 = por %p96, %p97
      %p100 = scmp.ne.s32.totalorder %s85, %s99
      %p101 = scmp.eq.s32.totalorder %s33, 0
      %p102 = por %p100, %p101
      %s104 = sadd.s32 %s103, 1
      %p107 = scmp.eq.s32.totalorder %s27, 1
      %p108 = scmp.ne.s32.totalorder %s103, %s105
      %p109 = scmp.eq.s32.totalorder %s27, 0
      %p110 = por %p108, %p109
      %p111 = scmp.ne.s32.totalorder %s103, %s105
      %p112 = scmp.eq.s32.totalorder %s32, 1
      %p113 = por %p111, %p112
      %p114 = scmp.ne.s32.totalorder %s105, %s106
      %p115 = scmp.eq.s32.totalorder %s32, 0
      %p116 = por %p114, %p115
      %p117 = scmp.ne.s32.totalorder %s105, %s106
      %p118 = scmp.eq.s32.totalorder %s33, 1
      %p119 = por %p117, %p118
      %p121 = scmp.ne.s32.totalorder %s106, %s120
      %p122 = scmp.eq.s32.totalorder %s33, 0
      %p123 = por %p121, %p122
      %s124 = ssub.s32 %s27, %s34
      %p125 = scmp.eq.s32.totalorder %s124, 0
      %s127 = sadd.s32 %s126, 1
      %s128 = scalar_select %p125, %s126, %s127
      %p131 = pneg %p125
      %p132 = scmp.eq.s32.totalorder %s27, 1
      %p133 = por %p131, %p132
      %p134 = scmp.ne.s32.totalorder %s126, %s129
      %p135 = scmp.eq.s32.totalorder %s27, 0
      %p136 = por %p134, %p135
      %p137 = scmp.ne.s32.totalorder %s126, %s129
      %p138 = scmp.eq.s32.totalorder %s32, 1
      %p139 = por %p137, %p138
      %p140 = scmp.ne.s32.totalorder %s129, %s130
      %p141 = scmp.eq.s32.totalorder %s32, 0
      %p142 = por %p140, %p141
      %p143 = scmp.ne.s32.totalorder %s129, %s130
      %p144 = scmp.eq.s32.totalorder %s33, 1
      %p145 = por %p143, %p144
      %p147 = scmp.ne.s32.totalorder %s130, %s146
      %p148 = scmp.eq.s32.totalorder %s33, 0
      %p149 = por %p147, %p148
      %s150 = ssub.s32 %s27, %s34
      %p151 = scmp.eq.s32.totalorder %s150, 0
      %s153 = sadd.s32 %s152, 1
      %s154 = scalar_select %p151, %s152, %s153
      %p157 = pneg %p151
      %p158 = scmp.eq.s32.totalorder %s27, 1
      %p159 = por %p157, %p158
      %p160 = scmp.ne.s32.totalorder %s152, %s155
      %p161 = scmp.eq.s32.totalorder %s27, 0
      %p162 = por %p160, %p161
      %p163 = scmp.ne.s32.totalorder %s152, %s155
      %p164 = scmp.eq.s32.totalorder %s32, 1
      %p165 = por %p163, %p164
      %p166 = scmp.ne.s32.totalorder %s155, %s156
      %p167 = scmp.eq.s32.totalorder %s32, 0
      %p168 = por %p166, %p167
      %p169 = scmp.ne.s32.totalorder %s155, %s156
      %p170 = scmp.eq.s32.totalorder %s33, 1
      %p171 = por %p169, %p170
      %p173 = scmp.ne.s32.totalorder %s156, %s172
      %p174 = scmp.eq.s32.totalorder %s33, 0
      %p175 = por %p173, %p174
      %s176 = ssub.s32 %s27, %s34
      %p177 = scmp.eq.s32.totalorder %s176, 0
      %s179 = sadd.s32 %s178, 1
      %s180 = scalar_select %p177, %s178, %s179
      %p183 = pneg %p177
      %p184 = scmp.eq.s32.totalorder %s27, 1
      %p185 = por %p183, %p184
      %p186 = scmp.ne.s32.totalorder %s178, %s181
      %p187 = scmp.eq.s32.totalorder %s27, 0
      %p188 = por %p186, %p187
      %p189 = scmp.ne.s32.totalorder %s178, %s181
      %p190 = scmp.eq.s32.totalorder %s32, 1
      %p191 = por %p189, %p190
      %p192 = scmp.ne.s32.totalorder %s181, %s182
      %p193 = scmp.eq.s32.totalorder %s32, 0
      %p194 = por %p192, %p193
      %p195 = scmp.ne.s32.totalorder %s181, %s182
      %p196 = scmp.eq.s32.totalorder %s33, 1
      %p197 = por %p195, %p196
      %p199 = scmp.ne.s32.totalorder %s182, %s198
      %p200 = scmp.eq.s32.totalorder %s33, 0
      %p201 = por %p199, %p200
      %p202 = scmp.le.s32.totalorder 1, %s27
      %p203 = scmp.lt.s32.totalorder %s27, 3
      %p204 = pnand %p202, %p203
      %p205 = pneg %p204
      // Predicated region
      $region9: #{tpu_custom_call.1} parent=5 // pred_check
        _
      $region10: #{tpu_custom_call.1} parent=5 // pred_check_branch
        %207 = sbr.rel (%p204) target = $region12
      $region11: #{tpu_custom_call.1} parent=5 // pred_region
        %s208 = ssub.s32 %s27, 1
        // Predicated region
        $region13: #{tpu_custom_call.1} parent=11 // pred_check
          %p209 = pneg %p74
        $region14: #{tpu_custom_call.1} parent=11 // pred_check_branch
          %211 = sbr.rel (%p209) target = $region16
        $region15: #{tpu_custom_call.1} parent=11 // pred_region
          _
        $region16: #{tpu_custom_call.1} parent=11 // pred_fallthru
          _
        // Predicated region
        $region17: #{tpu_custom_call.1} parent=11 // pred_check
          %p212 = pneg %p95
        $region18: #{tpu_custom_call.1} parent=11 // pred_check_branch
          %214 = sbr.rel (%p212) target = $region20
        $region19: #{tpu_custom_call.1} parent=11 // pred_region
          _
        $region20: #{tpu_custom_call.1} parent=11 // pred_fallthru
          _
        // Predicated region
        $region21: #{tpu_custom_call.1} parent=11 // pred_check
          %p215 = pneg %p116
        $region22: #{tpu_custom_call.1} parent=11 // pred_check_branch
          %217 = sbr.rel (%p215) target = $region24
        $region23: #{tpu_custom_call.1} parent=11 // pred_region
          _
        $region24: #{tpu_custom_call.1} parent=11 // pred_fallthru
          _
      $region12: #{tpu_custom_call.1} parent=5 // pred_fallthru
        _
      %p218 = scmp.lt.s32.totalorder %s27, 2
      // Predicated region
      $region25: #{tpu_custom_call.1} parent=5 // pred_check
        %p219 = pneg %p218
      $region26: #{tpu_custom_call.1} parent=5 // pred_check_branch
        %221 = sbr.rel (%p219) target = $region28
      $region27: #{tpu_custom_call.1} parent=5 // pred_region
        // Predicated region
        $region29: #{tpu_custom_call.1} parent=27 // pred_check
          %p222 = pneg %p47
        $region30: #{tpu_custom_call.1} parent=27 // pred_check_branch
          %224 = sbr.rel (%p222) target = $region32
        $region31: #{tpu_custom_call.1} parent=27 // pred_region
          %s225 = sand.u32 %s37, 1
          %s226 = scalar_lea.sflag [#allocation4], %s225
          %s227 = sand.u32 %s37, 1
          %s228 = smul.addr %s227, 8
          %s229 = scalar_lea.vmem [#allocation3], %s228
          %s231 = ssub.s32 128, 128
          %232 = vsyncadd %s226, %s231
          %s233 = smul.addr %s27, 128
          %s234 = scalar_lea.hbm %s0, %s233
          %s236 = sshll.u32 %s229, 4
          %s237 = int_to_ptr.vmem [resolvable:$true] %s236
          %239 = dma.hbm_to_vmem [thread:$0]  %s234, 128, %s237, %s226
        $region32: #{tpu_custom_call.1} parent=27 // pred_fallthru
          _
        // Predicated region
        $region33: #{tpu_custom_call.1} parent=27 // pred_check
          %p240 = pneg %p136
        $region34: #{tpu_custom_call.1} parent=27 // pred_check_branch
          %242 = sbr.rel (%p240) target = $region36
        $region35: #{tpu_custom_call.1} parent=27 // pred_region
          %s243 = sand.u32 %s126, 1
          %s244 = scalar_lea.sflag [#allocation7], %s243
          %s245 = sand.u32 %s126, 1
          %s246 = smul.addr %s245, 8
          %s247 = scalar_lea.vmem [#allocation6], %s246
          %s249 = ssub.s32 128, 128
          %250 = vsyncadd %s244, %s249
          %s251 = smul.addr %s27, 128
          %s252 = scalar_lea.hbm %s4, %s251
          %s254 = sshll.u32 %s247, 4
          %s255 = int_to_ptr.vmem [resolvable:$true] %s254
          %257 = dma.hbm_to_vmem [thread:$0]  %s252, 128, %s255, %s244
        $region36: #{tpu_custom_call.1} parent=27 // pred_fallthru
          _
      $region28: #{tpu_custom_call.1} parent=5 // pred_fallthru
        _
      %p258 = scmp.le.s32.totalorder 1, %s27
      %p259 = scmp.lt.s32.totalorder %s27, 3
      %p260 = pnand %p258, %p259
      %p261 = pneg %p260
      // Predicated region
      $region37: #{tpu_custom_call.1} parent=5 // pred_check
        _
      $region38: #{tpu_custom_call.1} parent=5 // pred_check_branch
        %263 = sbr.rel (%p260) target = $region40
      $region39: #{tpu_custom_call.1} parent=5 // pred_region
        %s264 = ssub.s32 %s27, 1
        %s265 = sand.u32 %s40, 1
        %s266 = scalar_lea.sflag [#allocation4], %s265
        %s267 = sand.u32 %s40, 1
        %s268 = smul.addr %s267, 8
        %s269 = scalar_lea.vmem [#allocation3], %s268
        // Predicated region
        $region41: #{tpu_custom_call.1} parent=39 // pred_check
          %p270 = pneg %p53
        $region42: #{tpu_custom_call.1} parent=39 // pred_check_branch
          %272 = sbr.rel (%p270) target = $region44
        $region43: #{tpu_custom_call.1} parent=39 // pred_region
          %273 = dma.done %s266, 128
        $region44: #{tpu_custom_call.1} parent=39 // pred_fallthru
          _
        %s274 = sand.u32 %s129, 1
        %s275 = scalar_lea.sflag [#allocation7], %s274
        %s276 = sand.u32 %s129, 1
        %s277 = smul.addr %s276, 8
        %s278 = scalar_lea.vmem [#allocation6], %s277
        // Predicated region
        $region45: #{tpu_custom_call.1} parent=39 // pred_check
          %p279 = pneg %p142
        $region46: #{tpu_custom_call.1} parent=39 // pred_check_branch
          %281 = sbr.rel (%p279) target = $region48
        $region47: #{tpu_custom_call.1} parent=39 // pred_region
          %282 = dma.done %s275, 128
        $region48: #{tpu_custom_call.1} parent=39 // pred_fallthru
          _
        %s283 = sand.u32 %s40, 1
        %s284 = scalar_lea.sflag [#allocation4], %s283
        %s285 = sand.u32 %s40, 1
        %s286 = smul.addr %s285, 8
        %s287 = scalar_lea.vmem [#allocation3], %s286
        %p288 = pneg %p53
        %p289 = pneg %p50
        %p290 = pneg %p74
        %p291 = pneg %p71
        %p292 = pneg %p95
        %p293 = pneg %p92
        %p294 = pneg %p116
        %p295 = pneg %p113
        %s296 = sand.u32 %s129, 1
        %s297 = scalar_lea.sflag [#allocation7], %s296
        %s298 = sand.u32 %s129, 1
        %s299 = smul.addr %s298, 8
        %s300 = scalar_lea.vmem [#allocation6], %s299
        %p301 = pneg %p142
        %p302 = pneg %p139
        %p303 = pneg %p168
        %p304 = pneg %p165
        %s305 = sand.u32 %s155, 1
        %s306 = scalar_lea.sflag [#allocation5], %s305
        %s307 = sand.u32 %s155, 1
        %s308 = smul.addr %s307, 8
        %s309 = scalar_lea.vmem [#allocation8], %s308
        %p310 = pneg %p194
        %p311 = pneg %p191
        %s312 = sand.u32 %s181, 1
        %s313 = scalar_lea.sflag [#allocation10], %s312
        %s314 = sand.u32 %s181, 1
        %s315 = smul.addr %s314, 8
        %s316 = scalar_lea.vmem [#allocation9], %s315
        %v317 = vld [vmem:[%s269] sm:$0xff]
        %v318 = vld [vmem:[%s1] sm:$0x1]
        %v320 = vlaneseq
        %v321 = vshrl.u32 %v320, 7
        %v322 = vsub.s32 0, %v321
        %v323 = vrot.slane %v318, %v322
        %v325 = vmul.f32 %v317, %v323
        %vm326 = vcmask 130048
        %v327 = vsel %vm326, %v325, 0.0
        %328 = vadd.xlane.f32.xlu0 %v327
        %v329 = vpop.xlane.xlu0 %328
        %v330 = vld [vmem:[%s2] sm:$0x1]
        %v332 = vlaneseq
        %v333 = vshrl.u32 %v332, 7
        %v334 = vsub.s32 0, %v333
        %v335 = vrot.slane %v330, %v334
        %v336 = vsel %vm326, %v335, 0
        %v339 = vsel %vm326, %v317, 0
        %341 = vmatprep.subr.mxu0 0.0
        %342 = vmatpush1.xpose.msra.mxu0 %v339
        %343 = vmatprep.subr.mxu0 0.0
        %344 = vmatpush1.xpose.msra.mxu0 0.0
        %345 = vmatprep.subr.mxu0 0.0
        %346 = vmatpush1.xpose.msra.mxu0 0.0
        %347 = vmatprep.subr.mxu0 0.0
        %348 = vmatpush1.xpose.msra.mxu0 0.0
        %349 = vmatprep.subr.mxu0 0.0
        %350 = vmatpush1.xpose.msra.mxu0 0.0
        %351 = vmatprep.subr.mxu0 0.0
        %352 = vmatpush1.xpose.msra.mxu0 0.0
        %353 = vmatprep.subr.mxu0 0.0
        %354 = vmatpush1.xpose.msra.mxu0 0.0
        %355 = vmatprep.subr.mxu0 0.0
        %356 = vmatpush1.xpose.msra.mxu0 0.0
        %357 = vmatprep.subr.mxu0 0.0
        %358 = vmatpush1.xpose.msra.mxu0 0.0
        %359 = vmatprep.subr.mxu0 0.0
        %360 = vmatpush1.xpose.msra.mxu0 0.0
        %361 = vmatprep.subr.mxu0 0.0
        %362 = vmatpush1.xpose.msra.mxu0 0.0
        %363 = vmatprep.subr.mxu0 0.0
        %364 = vmatpush1.xpose.msra.mxu0 0.0
        %365 = vmatprep.subr.mxu0 0.0
        %366 = vmatpush1.xpose.msra.mxu0 0.0
        %367 = vmatprep.subr.mxu0 0.0
        %368 = vmatpush1.xpose.msra.mxu0 0.0
        %369 = vmatprep.subr.mxu0 0.0
        %370 = vmatpush1.xpose.msra.mxu0 0.0
        %371 = vmatprep.subr.mxu0 0.0
        %372 = vmatpush1.xpose.msra.mxu0 0.0
        %373 = vmatprep.subr.mxu0 0.0
        %374 = vmatpush1.xpose.msra.mxu0 0.0
        %375 = vmatprep.subr.mxu0 0.0
        %376 = vmatpush1.xpose.msra.mxu0 0.0
        %377 = vmatprep.subr.mxu0 0.0
        %378 = vmatpush1.xpose.msra.mxu0 0.0
        %379 = vmatprep.subr.mxu0 0.0
        %380 = vmatpush1.xpose.msra.mxu0 0.0
        %381 = vmatprep.subr.mxu0 0.0
        %382 = vmatpush1.xpose.msra.mxu0 0.0
        %383 = vmatprep.subr.mxu0 0.0
        %384 = vmatpush1.xpose.msra.mxu0 0.0
        %385 = vmatprep.subr.mxu0 0.0
        %386 = vmatpush1.xpose.msra.mxu0 0.0
        %387 = vmatprep.subr.mxu0 0.0
        %388 = vmatpush1.xpose.msra.mxu0 0.0
        %389 = vmatprep.subr.mxu0 0.0
        %390 = vmatpush1.xpose.msra.mxu0 0.0
        %391 = vmatprep.subr.mxu0 0.0
        %392 = vmatpush1.xpose.msra.mxu0 0.0
        %393 = vmatprep.subr.mxu0 0.0
        %394 = vmatpush1.xpose.msra.mxu0 0.0
        %395 = vmatprep.subr.mxu0 0.0
        %396 = vmatpush1.xpose.msra.mxu0 0.0
        %397 = vmatprep.subr.mxu0 0.0
        %398 = vmatpush1.xpose.msra.mxu0 0.0
        %399 = vmatprep.subr.mxu0 0.0
        %400 = vmatpush1.xpose.msra.mxu0 0.0
        %401 = vmatprep.subr.mxu0 0.0
        %402 = vmatpush1.xpose.msra.mxu0 0.0
        %403 = vmatprep.subr.mxu0 0.0
        %404 = vmatpush1.xpose.msra.mxu0 0.0
        %405 = vmatprep.mubr.f32.mxu0 0.0
        %406 = vmatmul.mubr.f32.gmra.mrb[0].mxu0 %v336
        %v407 = vpop.f32.mrb[0].mxu0
        %v408 = vadd.f32 0.0, %v407
        %v409 = vpop.f32.mrb[0].mxu0
        %410 = vdwg.mxu0
        %v411 = vadd.f32 %v329, %v408
        %v412 = vld [vmem:[#allocation2] sm:$0x1]
        %v414 = vlaneseq
        %v415 = vshrl.u32 %v414, 7
        %v416 = vsub.s32 0, %v415
        %v417 = vrot.slane %v412, %v416
        %418 = vset.pattern.permute.xlu0 0
        %419 = vperm.xlu0 %418, %v417
        %v420 = vpop.permute.xlu0 %419
        %v422 = vadd.f32 %v411, %v420
        %v423 = vmax.f32 %v422, 0.0
        %v424 = vsub.f32 0.0, %v423
        %v425 = vmul.f32 %v424, 1.442695
        %v426 = vpow.pop %v425
        %v427 = vadd.f32 %v426, 1.0
        %v428 = vrcp.pop %v427
        %v429 = vmul.f32 1.0, %v428
        %vm430 = vcmask 64512
        %v431 = vsel %vm430, %v429, inf
        %432 = vmin.xlane.f32.xlu0 %v431
        %v433 = vpop.xlane.xlu0 %432
        %v434 = vrot.slane %v433, 4
        %v435 = vmin.f32 %v433, %v434
        %v436 = vrot.slane %v435, 2
        %v437 = vmin.f32 %v435, %v436
        %v438 = vrot.slane %v437, 1
        %v439 = vmin.f32 %v437, %v438
        %v440 = vsel %vm430, %v429, -inf
        %441 = vmax.xlane.f32.xlu0 %v440
        %v442 = vpop.xlane.xlu0 %441
        %v443 = vrot.slane %v442, 4
        %v444 = vmax.f32 %v442, %v443
        %v445 = vrot.slane %v444, 2
        %v446 = vmax.f32 %v444, %v445
        %v447 = vrot.slane %v446, 1
        %v448 = vmax.f32 %v446, %v447
        %v449 = vsub.f32 %v429, %v439
        %v450 = vsub.f32 %v448, %v439
        %v451 = vadd.f32 %v450, 1e-06
        %v452 = vrcp.pop %v451
        %v453 = vmul.f32 %v449, %v452
        %454 = vst.msk [vmem:[%s309] sm:$0xff] %vm430, %v453
        %v455 = vld [vmem:[%s278] sm:$0xff]
        %v456 = vsub.f32 1.0, %v453
        %vm457 = vcmp.gt.f32.partialorder %v455, %v456
        %v458 = vsel %vm457, 1, 0
        %459 = vst.msk [vmem:[%s316] sm:$0xff] %vm430, %v458
        %s460 = sand.u32 %s155, 1
        %s461 = scalar_lea.sflag [#allocation5], %s460
        %s462 = sand.u32 %s155, 1
        %s463 = smul.addr %s462, 8
        %s464 = scalar_lea.vmem [#allocation8], %s463
        %s465 = sand.u32 %s181, 1
        %s466 = scalar_lea.sflag [#allocation10], %s465
        %s467 = sand.u32 %s181, 1
        %s468 = smul.addr %s467, 8
        %s469 = scalar_lea.vmem [#allocation9], %s468
        // Predicated region
        $region49: #{tpu_custom_call.1} parent=39 // pred_check
          %p470 = pneg %p165
        $region50: #{tpu_custom_call.1} parent=39 // pred_check_branch
          %472 = sbr.rel (%p470) target = $region52
        $region51: #{tpu_custom_call.1} parent=39 // pred_region
          %s474 = ssub.s32 128, 128
          %475 = vsyncadd %s461, %s474
          %s476 = smul.addr %s32, 128
          %s477 = scalar_lea.hbm %s5, %s476
          %s479 = sshll.u32 %s464, 4
          %s480 = int_to_ptr.vmem [resolvable:$true] %s479
          %482 = dma.vmem_to_hbm [thread:$0]  %s480, 128, %s477, %s461
        $region52: #{tpu_custom_call.1} parent=39 // pred_fallthru
          _
        // Predicated region
        $region53: #{tpu_custom_call.1} parent=39 // pred_check
          %p483 = pneg %p191
        $region54: #{tpu_custom_call.1} parent=39 // pred_check_branch
          %485 = sbr.rel (%p483) target = $region56
        $region55: #{tpu_custom_call.1} parent=39 // pred_region
          %s487 = ssub.s32 128, 128
          %488 = vsyncadd %s466, %s487
          %s489 = smul.addr %s32, 128
          %s490 = scalar_lea.hbm %s6, %s489
          %s492 = sshll.u32 %s469, 4
          %s493 = int_to_ptr.vmem [resolvable:$true] %s492
          %495 = dma.vmem_to_hbm [thread:$0]  %s493, 128, %s490, %s466
        $region56: #{tpu_custom_call.1} parent=39 // pred_fallthru
          _
      $region40: #{tpu_custom_call.1} parent=5 // pred_fallthru
        _
      %p496 = scmp.le.s32.totalorder 2, %s27
      // Predicated region
      $region57: #{tpu_custom_call.1} parent=5 // pred_check
        %p497 = pneg %p496
      $region58: #{tpu_custom_call.1} parent=5 // pred_check_branch
        %499 = sbr.rel (%p497) target = $region60
      $region59: #{tpu_custom_call.1} parent=5 // pred_region
        %s500 = ssub.s32 %s27, 2
        // Predicated region
        $region61: #{tpu_custom_call.1} parent=59 // pred_check
          %p501 = pneg %p171
        $region62: #{tpu_custom_call.1} parent=59 // pred_check_branch
          %503 = sbr.rel (%p501) target = $region64
        $region63: #{tpu_custom_call.1} parent=59 // pred_region
          %s504 = sand.u32 %s156, 1
          %s505 = scalar_lea.sflag [#allocation5], %s504
          %s506 = sand.u32 %s156, 1
          %s507 = smul.addr %s506, 8
          %s508 = scalar_lea.vmem [#allocation8], %s507
          %509 = dma.done %s505, 128
        $region64: #{tpu_custom_call.1} parent=59 // pred_fallthru
          _
        // Predicated region
        $region65: #{tpu_custom_call.1} parent=59 // pred_check
          %p510 = pneg %p197
        $region66: #{tpu_custom_call.1} parent=59 // pred_check_branch
          %512 = sbr.rel (%p510) target = $region68
        $region67: #{tpu_custom_call.1} parent=59 // pred_region
          %s513 = sand.u32 %s182, 1
          %s514 = scalar_lea.sflag [#allocation10], %s513
          %s515 = sand.u32 %s182, 1
          %s516 = smul.addr %s515, 8
          %s517 = scalar_lea.vmem [#allocation9], %s516
          %518 = dma.done %s514, 128
        $region68: #{tpu_custom_call.1} parent=59 // pred_fallthru
          _
      $region60: #{tpu_custom_call.1} parent=5 // pred_fallthru
        _
    $region6: #{tpu_custom_call.1} parent=1 // loop_footer
      %s31 = sadd.s32 1, %s27
    $region7: #{tpu_custom_call.1} parent=1 // loop_footer_branch
      %26 = sbr.rel target = $region3
    $region8: #{tpu_custom_call.1} parent=1 // loop_exit
      _
    %519 = vsyncpa [#allocation4], 1
    %s520 = scalar_lea.sflag [#allocation4], 1
    %521 = vsyncpa %s520, 1
    %522 = vsyncpa [#allocation7], 1
    %s523 = scalar_lea.sflag [#allocation7], 1
    %524 = vsyncpa %s523, 1
    %525 = vsyncpa [#allocation5], 1
    %s526 = scalar_lea.sflag [#allocation5], 1
    %527 = vsyncpa %s526, 1
    %528 = vsyncpa [#allocation10], 1
    %s529 = scalar_lea.sflag [#allocation10], 1
    %530 = vsyncpa %s529, 1

</llo_original>
